<compile_context>
chip_gen: v5e
topology: v5e:2x2
jax: 0.10.0
libtpu: 0.0.40
codegen_flags: <defaults>
</compile_context>

<pallas_src>
import jax
import jax.numpy as jnp
from jax.experimental import pallas as pl
from jax.experimental.pallas import tpu as pltpu

EPSILON = 1e-5
_N_CORE_SPLIT = 2                  # reduction split across TensorCores (v7x)
_TARGET_BLOCK_ELEMS = 256 * 1024   # ~1 MiB f32 per input tile


def _make_dice_kernel(rows_total, block_rows, tiles_per_core, needs_mask):
    def kernel(pre_ref, tar_ref, inter_out_ref, union_out_ref,
               inter_acc, union_acc):
        c = pl.program_id(0)          # TensorCore-split axis ("parallel")
        t = pl.program_id(1)          # reduction axis ("arbitrary")

        @pl.when(t == 0)
        def _init():
            inter_acc[...] = jnp.zeros_like(inter_acc)
            union_acc[...] = jnp.zeros_like(union_acc)

        p = pre_ref[...].astype(jnp.float32)
        tg = tar_ref[...].astype(jnp.float32)
        prod = p * tg
        ssum = p + tg

        if needs_mask:
            # Logical (unclamped) tile index; rows past the real extent are
            # zeroed so ragged / clamped duplicate edge tiles contribute nothing.
            r = c * tiles_per_core + t
            valid_rows = rows_total - r * block_rows
            row_idx = jax.lax.broadcasted_iota(jnp.int32, prod.shape, 0)
            in_range = row_idx < valid_rows
            prod = jnp.where(in_range, prod, 0.0)
            ssum = jnp.where(in_range, ssum, 0.0)

        inter_acc[...] += prod
        union_acc[...] += ssum

        @pl.when(t == tiles_per_core - 1)
        def _finalize():
            inter_total = jnp.sum(inter_acc[...])
            union_total = jnp.sum(union_acc[...])
            inter_out_ref[...] = jnp.broadcast_to(inter_total, inter_out_ref.shape)
            union_out_ref[...] = jnp.broadcast_to(union_total, union_out_ref.shape)

    return kernel


def dice_loss(predict, target):
    assert predict.shape == target.shape, "predict and target must have same shape"
    flat_p = predict.reshape(-1)
    flat_t = target.reshape(-1)
    n = flat_p.shape[0]

    # Lane-dense column width that divides the flattened length (no pad copy).
    cols = next((c for c in (1024, 512, 256, 128) if n % c == 0), None)
    if cols is None:
        # TODO(synk): ragged flattened length (not a multiple of 128); the
        # minimal zero-pad below costs one extra HBM copy of each input.
        cols = 128
        pad = (-n) % cols
        flat_p = jnp.pad(flat_p, (0, pad))
        flat_t = jnp.pad(flat_t, (0, pad))
        n += pad

    rows = n // cols
    block_rows = min(max(8, _TARGET_BLOCK_ELEMS // cols), rows)
    tiles_total = pl.cdiv(rows, block_rows)
    tiles_per_core = pl.cdiv(tiles_total, _N_CORE_SPLIT)
    needs_mask = (rows % block_rows != 0) or (
        _N_CORE_SPLIT * tiles_per_core != tiles_total)

    pre2d = flat_p.reshape(rows, cols)
    tar2d = flat_t.reshape(rows, cols)

    def in_map(c, t):
        r = c * tiles_per_core + t
        return (jnp.minimum(r, tiles_total - 1), 0)   # clamp: DMA stays in bounds

    out_map = lambda c, t: (c, 0, 0)
    partial_shape = jax.ShapeDtypeStruct((_N_CORE_SPLIT, 8, 128), jnp.float32)

    kernel = _make_dice_kernel(rows, block_rows, tiles_per_core, needs_mask)

    inter_p, union_p = pl.pallas_call(
        kernel,
        out_shape=(partial_shape, partial_shape),
        grid_spec=pltpu.PrefetchScalarGridSpec(
            num_scalar_prefetch=0,
            grid=(_N_CORE_SPLIT, tiles_per_core),
            in_specs=[
                pl.BlockSpec((block_rows, cols), in_map),
                pl.BlockSpec((block_rows, cols), in_map),
            ],
            out_specs=[
                pl.BlockSpec((1, 8, 128), out_map),
                pl.BlockSpec((1, 8, 128), out_map),
            ],
            scratch_shapes=[
                pltpu.VMEM((block_rows, cols), jnp.float32),  # intersection acc
                pltpu.VMEM((block_rows, cols), jnp.float32),  # union acc
            ],
        ),
        compiler_params=pltpu.CompilerParams(
            dimension_semantics=("parallel", "arbitrary"),
        ),
    )(pre2d, tar2d)

    intersection = inter_p[:, 0, 0].sum()
    union = union_p[:, 0, 0].sum()
    return 1.0 - 2.0 * (intersection + EPSILON) / (union + EPSILON)


def dice_loss_ref(predict, target):
    num = predict.shape[0]
    pre = predict.reshape(num, -1).astype(jnp.float32)
    tar = target.reshape(num, -1).astype(jnp.float32)
    intersection = (pre * tar).sum(-1).sum()
    union = (pre + tar).sum(-1).sum()
    return 1.0 - 2.0 * (intersection + EPSILON) / (union + EPSILON)


if __name__ == "__main__":
    key = jax.random.PRNGKey(0)

    shapes = [
        (2, 4, 16, 16),    # primary spec shape: single lane-dense tile
        (8, 8, 128, 64),   # multiple row tiles: exercises the 2-way core split
        (2, 4, 16, 17),    # cols=128 path + fully-masked duplicate edge tile
    ]
    for shape in shapes:
        key, k1, k2 = jax.random.split(key, 3)
        x = jax.nn.sigmoid(jax.random.normal(k1, shape, dtype=jnp.float32))
        y = (jax.random.uniform(k2, shape) > 0.5).astype(jnp.float32)

        score = jax.block_until_ready(dice_loss(x, y))
        ref = dice_loss_ref(x, y)
        assert jnp.allclose(score, ref, atol=2e-4, rtol=2e-4), (shape, score, ref)

    print("KERNEL_OK")
</pallas_src>

<mosaic_0001>
module attributes {stable_mosaic.version = 11 : i64} {
  func.func @kernel(%arg0: i32, %arg1: i32, %arg2: memref<2x1024xf32, #tpu.memory_space<vmem>>, %arg3: memref<2x1024xf32, #tpu.memory_space<vmem>>, %arg4: memref<1x8x128xf32, #tpu.memory_space<vmem>>, %arg5: memref<1x8x128xf32, #tpu.memory_space<vmem>>, %arg6: memref<2x1024xf32, #tpu.memory_space<vmem>>, %arg7: memref<2x1024xf32, #tpu.memory_space<vmem>>) attributes {dimension_semantics = [#tpu.dimension_semantics<parallel>, #tpu.dimension_semantics<arbitrary>], iteration_bounds = array<i64: 2, 1>, scalar_prefetch = 0 : i64, scratch_operands = 2 : i64, tpu.core_type = #tpu.core_type<tc>, window_params = [{transform_indices = @transform_0, window_bounds = array<i64: 2, 1024>}, {transform_indices = @transform_1, window_bounds = array<i64: 2, 1024>}, {transform_indices = @transform_2, window_bounds = array<i64: 1, 8, 128>}, {transform_indices = @transform_3, window_bounds = array<i64: 1, 8, 128>}]} {
    %c0_i32 = arith.constant 0 : i32
    %0 = arith.cmpi eq, %arg1, %c0_i32 : i32
    %1 = arith.extui %0 : i1 to i32
    %c0_i32_0 = arith.constant 0 : i32
    %2 = arith.cmpi ne, %1, %c0_i32_0 : i32
    scf.if %2 {
      %cst_16 = arith.constant 0.000000e+00 : f32
      %27 = vector.broadcast %cst_16 : f32 to vector<2x1024xf32>
      %c0_17 = arith.constant 0 : index
      %c0_18 = arith.constant 0 : index
      %28 = vector.load %arg6[%c0_17, %c0_18] : memref<2x1024xf32, #tpu.memory_space<vmem>>, vector<2x1024xf32>
      tpu.vector_store %arg6[%c0_17, %c0_18], %27 {strides = array<i32>} : memref<2x1024xf32, #tpu.memory_space<vmem>>, vector<2x1024xf32>,
      %cst_19 = arith.constant 0.000000e+00 : f32
      %29 = vector.broadcast %cst_19 : f32 to vector<2x1024xf32>
      %c0_20 = arith.constant 0 : index
      %c0_21 = arith.constant 0 : index
      %30 = vector.load %arg7[%c0_20, %c0_21] : memref<2x1024xf32, #tpu.memory_space<vmem>>, vector<2x1024xf32>
      tpu.vector_store %arg7[%c0_20, %c0_21], %29 {strides = array<i32>} : memref<2x1024xf32, #tpu.memory_space<vmem>>, vector<2x1024xf32>,
    } else {
    }
    %c0 = arith.constant 0 : index
    %c0_1 = arith.constant 0 : index
    %3 = vector.load %arg2[%c0, %c0_1] : memref<2x1024xf32, #tpu.memory_space<vmem>>, vector<2x1024xf32>
    %c0_2 = arith.constant 0 : index
    %c0_3 = arith.constant 0 : index
    %4 = vector.load %arg3[%c0_2, %c0_3] : memref<2x1024xf32, #tpu.memory_space<vmem>>, vector<2x1024xf32>
    %5 = arith.mulf %3, %4 : vector<2x1024xf32>
    %6 = arith.addf %3, %4 : vector<2x1024xf32>
    %c1_i32 = arith.constant 1 : i32
    %7 = arith.muli %arg0, %c1_i32 : i32
    %8 = arith.addi %7, %arg1 : i32
    %c2_i32 = arith.constant 2 : i32
    %9 = arith.muli %8, %c2_i32 : i32
    %c2_i32_4 = arith.constant 2 : i32
    %10 = arith.subi %c2_i32_4, %9 : i32
    %11 = tpu.iota {dimensions = array<i32: 0>} : vector<2x1024xi32>
    %12 = vector.broadcast %10 : i32 to vector<2x1024xi32>
    %13 = arith.cmpi slt, %11, %12 : vector<2x1024xi32>
    %cst = arith.constant 0.000000e+00 : f32
    %14 = vector.broadcast %cst : f32 to vector<2x1024xf32>
    %15 = arith.select %13, %5, %14 : vector<2x1024xi1>, vector<2x1024xf32>
    %cst_5 = arith.constant 0.000000e+00 : f32
    %16 = vector.broadcast %cst_5 : f32 to vector<2x1024xf32>
    %17 = arith.select %13, %6, %16 : vector<2x1024xi1>, vector<2x1024xf32>
    %c0_6 = arith.constant 0 : index
    %c0_7 = arith.constant 0 : index
    %18 = vector.load %arg6[%c0_6, %c0_7] : memref<2x1024xf32, #tpu.memory_space<vmem>>, vector<2x1024xf32>
    %19 = arith.addf %18, %15 : vector<2x1024xf32>
    %c0_8 = arith.constant 0 : index
    %c0_9 = arith.constant 0 : index
    %20 = vector.load %arg6[%c0_8, %c0_9] : memref<2x1024xf32, #tpu.memory_space<vmem>>, vector<2x1024xf32>
    tpu.vector_store %arg6[%c0_8, %c0_9], %19 {strides = array<i32>} : memref<2x1024xf32, #tpu.memory_space<vmem>>, vector<2x1024xf32>,
    %c0_10 = arith.constant 0 : index
    %c0_11 = arith.constant 0 : index
    %21 = vector.load %arg7[%c0_10, %c0_11] : memref<2x1024xf32, #tpu.memory_space<vmem>>, vector<2x1024xf32>
    %22 = arith.addf %21, %17 : vector<2x1024xf32>
    %c0_12 = arith.constant 0 : index
    %c0_13 = arith.constant 0 : index
    %23 = vector.load %arg7[%c0_12, %c0_13] : memref<2x1024xf32, #tpu.memory_space<vmem>>, vector<2x1024xf32>
    tpu.vector_store %arg7[%c0_12, %c0_13], %22 {strides = array<i32>} : memref<2x1024xf32, #tpu.memory_space<vmem>>, vector<2x1024xf32>,
    %c0_i32_14 = arith.constant 0 : i32
    %24 = arith.cmpi eq, %arg1, %c0_i32_14 : i32
    %25 = arith.extui %24 : i1 to i32
    %c0_i32_15 = arith.constant 0 : i32
    %26 = arith.cmpi ne, %25, %c0_i32_15 : i32
    scf.if %26 {
      %c0_16 = arith.constant 0 : index
      %c0_17 = arith.constant 0 : index
      %27 = vector.load %arg6[%c0_16, %c0_17] : memref<2x1024xf32, #tpu.memory_space<vmem>>, vector<2x1024xf32>
      %28 = vector.shape_cast %27 : vector<2x1024xf32> to vector<1x2x1024xf32>
      %cst_18 = arith.constant dense<0.000000e+00> : vector<1xf32>
      %29 = vector.multi_reduction <add>, %28, %cst_18 [1, 2] : vector<1x2x1024xf32> to vector<1xf32>
      %30 = vector.shape_cast %29 : vector<1xf32> to vector<1x1x1xf32>
      %31 = vector.extract %30[0, 0, 0] : f32 from vector<1x1x1xf32>
      %c0_19 = arith.constant 0 : index
      %c0_20 = arith.constant 0 : index
      %32 = vector.load %arg7[%c0_19, %c0_20] : memref<2x1024xf32, #tpu.memory_space<vmem>>, vector<2x1024xf32>
      %33 = vector.shape_cast %32 : vector<2x1024xf32> to vector<1x2x1024xf32>
      %cst_21 = arith.constant dense<0.000000e+00> : vector<1xf32>
      %34 = vector.multi_reduction <add>, %33, %cst_21 [1, 2] : vector<1x2x1024xf32> to vector<1xf32>
      %35 = vector.shape_cast %34 : vector<1xf32> to vector<1x1x1xf32>
      %36 = vector.extract %35[0, 0, 0] : f32 from vector<1x1x1xf32>
      %37 = vector.broadcast %31 : f32 to vector<1x8x128xf32>
      %c0_22 = arith.constant 0 : index
      %c0_23 = arith.constant 0 : index
      %c0_24 = arith.constant 0 : index
      %38 = vector.load %arg4[%c0_22, %c0_23, %c0_24] : memref<1x8x128xf32, #tpu.memory_space<vmem>>, vector<1x8x128xf32>
      tpu.vector_store %arg4[%c0_22, %c0_23, %c0_24], %37 {strides = array<i32>} : memref<1x8x128xf32, #tpu.memory_space<vmem>>, vector<1x8x128xf32>,
      %39 = vector.broadcast %36 : f32 to vector<1x8x128xf32>
      %c0_25 = arith.constant 0 : index
      %c0_26 = arith.constant 0 : index
      %c0_27 = arith.constant 0 : index
      %40 = vector.load %arg5[%c0_25, %c0_26, %c0_27] : memref<1x8x128xf32, #tpu.memory_space<vmem>>, vector<1x8x128xf32>
      tpu.vector_store %arg5[%c0_25, %c0_26, %c0_27], %39 {strides = array<i32>} : memref<1x8x128xf32, #tpu.memory_space<vmem>>, vector<1x8x128xf32>,
    } else {
    }
    return
  }
  func.func @transform_0(%arg0: i32, %arg1: i32) -> (i32, i32) {
    %c1_i32 = arith.constant 1 : i32
    %0 = arith.muli %arg0, %c1_i32 : i32
    %1 = arith.addi %0, %arg1 : i32
    %c0_i32 = arith.constant 0 : i32
    %2 = arith.minsi %1, %c0_i32 : i32
    %c0_i32_0 = arith.constant 0 : i32
    %c0_i32_1 = arith.constant 0 : i32
    return %2, %c0_i32_0 : i32, i32
  }
  func.func @transform_1(%arg0: i32, %arg1: i32) -> (i32, i32) {
    %c1_i32 = arith.constant 1 : i32
    %0 = arith.muli %arg0, %c1_i32 : i32
    %1 = arith.addi %0, %arg1 : i32
    %c0_i32 = arith.constant 0 : i32
    %2 = arith.minsi %1, %c0_i32 : i32
    %c0_i32_0 = arith.constant 0 : i32
    %c0_i32_1 = arith.constant 0 : i32
    return %2, %c0_i32_0 : i32, i32
  }
  func.func @transform_2(%arg0: i32, %arg1: i32) -> (i32, i32, i32) {
    %c0_i32 = arith.constant 0 : i32
    %c0_i32_0 = arith.constant 0 : i32
    %c0_i32_1 = arith.constant 0 : i32
    return %arg0, %c0_i32, %c0_i32_0 : i32, i32, i32
  }
  func.func @transform_3(%arg0: i32, %arg1: i32) -> (i32, i32, i32) {
    %c0_i32 = arith.constant 0 : i32
    %c0_i32_0 = arith.constant 0 : i32
    %c0_i32_1 = arith.constant 0 : i32
    return %arg0, %c0_i32, %c0_i32_0 : i32, i32, i32
  }
}

</mosaic_0001>

<llo_original>
// kernel: tpu_custom_call.1
$region0: #{tpu_custom_call.1}
  #allocation0 [shape = 'u32[]', space=smem, size = 0x4, offset = 0x4, fixed_abs, tag = 'smem constant byte address 0x4 - core index']
  #allocation1 [shape = 'u32[72,128]{1,0:T(1,128)}', space=vmem, size = 0x9000, scoped, tag = 'internal scratch']
  #allocation2 [shape = 'f32[2,1024]{1,0:T(2,128)}', space=vmem, size = 0x2000, scoped, tag = 'scratch operand']
  #allocation3 [shape = 'f32[2,1024]{1,0:T(2,128)}', space=vmem, size = 0x2000, scoped, tag = 'scratch operand']
  %s0 = inlined_call_operand.hbm [shape: f32[2,1024], index: 0, kind: input, shape index: {}]
  %s1 = inlined_call_operand.hbm [shape: f32[2,1024], index: 1, kind: input, shape index: {}]
  %s2 = inlined_call_operand.hbm [shape: f32[2,8,128], index: 2, kind: output, shape index: {0}]
  %s3 = inlined_call_operand.hbm [shape: f32[2,8,128], index: 3, kind: output, shape index: {1}]
  %4 = xla_tuple %s2, %s3
  %s5 = sld [smem:[#allocation0]]
  $region65: #{tpu_custom_call.1} parent=0
    _
  %s7 = ssub.s32 1, %s5
  %s8 = scalar_select 0, %s7, %s5
  $region1: #{tpu_custom_call.1} parent=0
    #allocation4 [shape = 'u8[16384]{0}', space=vmem, size = 0x4000, scoped, tag = 'input window, operand 0']
    #allocation5 [shape = 's32[2]{0}', space=sflag, size = 0x8, scoped, tag = 'scoped memory for tpu_custom_call.1']
    #allocation6 [shape = 's32[2]{0}', space=sflag, size = 0x8, scoped, tag = 'scoped memory for tpu_custom_call.1']
    #allocation7 [shape = 'u8[16384]{0}', space=vmem, size = 0x4000, scoped, tag = 'input window, operand 1']
    #allocation8 [shape = 's32[2]{0}', space=sflag, size = 0x8, scoped, tag = 'scoped memory for tpu_custom_call.1']
    #allocation9 [shape = 'u8[8192]{0}', space=vmem, size = 0x2000, scoped, tag = 'output window, operand 0']
    #allocation10 [shape = 'u8[8192]{0}', space=vmem, size = 0x2000, scoped, tag = 'output window, operand 1']
    #allocation11 [shape = 's32[2]{0}', space=sflag, size = 0x8, scoped, tag = 'scoped memory for tpu_custom_call.1']
    %9 = vsyncpa [#allocation5], 0
    %s10 = scalar_lea.sflag [#allocation5], 1
    %11 = vsyncpa %s10, 0
    %12 = vsyncpa [#allocation8], 0
    %s13 = scalar_lea.sflag [#allocation8], 1
    %14 = vsyncpa %s13, 0
    %15 = vsyncpa [#allocation6], 0
    %s16 = scalar_lea.sflag [#allocation6], 1
    %17 = vsyncpa %s16, 0
    %18 = vsyncpa [#allocation11], 0
    %s19 = scalar_lea.sflag [#allocation11], 1
    %20 = vsyncpa %s19, 0
    loop: start=0, step=1, limit=4
    $region2: #{tpu_custom_call.1} parent=1 // loop_pre_header
      _
    $region3: #{tpu_custom_call.1} parent=1 // loop_header
      %s22 = sphi 0, %s26
      %p23 = scmp.ge.s32.totalorder %s22, 4
      %s29 = sphi 0, %s41
      %s30 = sphi 0, %s37
      %s31 = sphi 0, %s29
      %s32 = sphi 0, %s30
      %s33 = sphi 0, %s31
      %s34 = sphi 0, %s32
      %s50 = sphi 0, %s52
      %s53 = sphi 0, %s50
      %s54 = sphi 0, %s53
      %s70 = sphi 0, %s54
      %s82 = sphi 0, %s84
      %s85 = sphi 0, %s82
      %s86 = sphi 0, %s85
      %s102 = sphi 0, %s86
      %s108 = sphi 0, %s110
      %s111 = sphi 0, %s108
      %s112 = sphi 0, %s111
      %s128 = sphi 0, %s112
      %s134 = sphi 0, %s136
      %s137 = sphi 0, %s134
      %s138 = sphi 0, %s137
      %s154 = sphi 0, %s138
    $region4: #{tpu_custom_call.1} parent=1 // loop_header_branch
      %25 = sbr.rel (%p23) target = $region8
    $region5: #{tpu_custom_call.1} parent=1 // loop_body
      %s27 = ssub.s32 %s22, 1
      %s28 = ssub.s32 %s22, 2
      %s35 = sadd.s32 1, %s30
      %p36 = scmp.ge.s32.totalorder %s35, 1
      %s37 = scalar_select %p36, 0, %s35
      %s38 = sadd.s32 1, %s29
      %s39 = scalar_select %p36, %s38, %s29
      %p40 = scmp.ge.s32.totalorder %s39, 2
      %s41 = scalar_select %p40, 0, %s39
      %s42 = sadd.s32 %s29, %s30
      %p43 = scmp.lt.s32.totalorder %s42, 0
      %s44 = scalar_select %p43, %s42, 0
      %s45 = sadd.s32 %s41, %s37
      %p46 = scmp.lt.s32.totalorder %s45, 0
      %s47 = scalar_select %p46, %s45, 0
      %s48 = ssub.s32 %s44, %s47
      %p49 = scmp.eq.s32.totalorder %s48, 0
      %s51 = sadd.s32 %s50, 1
      %s52 = scalar_select %p49, %s50, %s51
      %p55 = pneg %p49
      %p56 = scmp.eq.s32.totalorder %s22, 1
      %p57 = por %p55, %p56
      %p58 = scmp.ne.s32.totalorder %s50, %s53
      %p59 = scmp.eq.s32.totalorder %s22, 0
      %p60 = por %p58, %p59
      %p61 = scmp.ne.s32.totalorder %s50, %s53
      %p62 = scmp.eq.s32.totalorder %s27, 1
      %p63 = por %p61, %p62
      %p64 = scmp.ne.s32.totalorder %s53, %s54
      %p65 = scmp.eq.s32.totalorder %s27, 0
      %p66 = por %p64, %p65
      %p67 = scmp.ne.s32.totalorder %s53, %s54
      %p68 = scmp.eq.s32.totalorder %s28, 1
      %p69 = por %p67, %p68
      %p71 = scmp.ne.s32.totalorder %s54, %s70
      %p72 = scmp.eq.s32.totalorder %s28, 0
      %p73 = por %p71, %p72
      %s74 = sadd.s32 %s29, %s30
      %p75 = scmp.lt.s32.totalorder %s74, 0
      %s76 = scalar_select %p75, %s74, 0
      %s77 = sadd.s32 %s41, %s37
      %p78 = scmp.lt.s32.totalorder %s77, 0
      %s79 = scalar_select %p78, %s77, 0
      %s80 = ssub.s32 %s76, %s79
      %p81 = scmp.eq.s32.totalorder %s80, 0
      %s83 = sadd.s32 %s82, 1
      %s84 = scalar_select %p81, %s82, %s83
      %p87 = pneg %p81
      %p88 = scmp.eq.s32.totalorder %s22, 1
      %p89 = por %p87, %p88
      %p90 = scmp.ne.s32.totalorder %s82, %s85
      %p91 = scmp.eq.s32.totalorder %s22, 0
      %p92 = por %p90, %p91
      %p93 = scmp.ne.s32.totalorder %s82, %s85
      %p94 = scmp.eq.s32.totalorder %s27, 1
      %p95 = por %p93, %p94
      %p96 = scmp.ne.s32.totalorder %s85, %s86
      %p97 = scmp.eq.s32.totalorder %s27, 0
      %p98 = por %p96, %p97
      %p99 = scmp.ne.s32.totalorder %s85, %s86
      %p100 = scmp.eq.s32.totalorder %s28, 1
      %p101 = por %p99, %p100
      %p103 = scmp.ne.s32.totalorder %s86, %s102
      %p104 = scmp.eq.s32.totalorder %s28, 0
      %p105 = por %p103, %p104
      %s106 = ssub.s32 %s29, %s41
      %p107 = scmp.eq.s32.totalorder %s106, 0
      %s109 = sadd.s32 %s108, 1
      %s110 = scalar_select %p107, %s108, %s109
      %p113 = pneg %p107
      %p114 = scmp.eq.s32.totalorder %s22, 1
      %p115 = por %p113, %p114
      %p116 = scmp.ne.s32.totalorder %s108, %s111
      %p117 = scmp.eq.s32.totalorder %s22, 0
      %p118 = por %p116, %p117
      %p119 = scmp.ne.s32.totalorder %s108, %s111
      %p120 = scmp.eq.s32.totalorder %s27, 1
      %p121 = por %p119, %p120
      %p122 = scmp.ne.s32.totalorder %s111, %s112
      %p123 = scmp.eq.s32.totalorder %s27, 0
      %p124 = por %p122, %p123
      %p125 = scmp.ne.s32.totalorder %s111, %s112
      %p126 = scmp.eq.s32.totalorder %s28, 1
      %p127 = por %p125, %p126
      %p129 = scmp.ne.s32.totalorder %s112, %s128
      %p130 = scmp.eq.s32.totalorder %s28, 0
      %p131 = por %p129, %p130
      %s132 = ssub.s32 %s29, %s41
      %p133 = scmp.eq.s32.totalorder %s132, 0
      %s135 = sadd.s32 %s134, 1
      %s136 = scalar_select %p133, %s134, %s135
      %p139 = pneg %p133
      %p140 = scmp.eq.s32.totalorder %s22, 1
      %p141 = por %p139, %p140
      %p142 = scmp.ne.s32.totalorder %s134, %s137
      %p143 = scmp.eq.s32.totalorder %s22, 0
      %p144 = por %p142, %p143
      %p145 = scmp.ne.s32.totalorder %s134, %s137
      %p146 = scmp.eq.s32.totalorder %s27, 1
      %p147 = por %p145, %p146
      %p148 = scmp.ne.s32.totalorder %s137, %s138
      %p149 = scmp.eq.s32.totalorder %s27, 0
      %p150 = por %p148, %p149
      %p151 = scmp.ne.s32.totalorder %s137, %s138
      %p152 = scmp.eq.s32.totalorder %s28, 1
      %p153 = por %p151, %p152
      %p155 = scmp.ne.s32.totalorder %s138, %s154
      %p156 = scmp.eq.s32.totalorder %s28, 0
      %p157 = por %p155, %p156
      %p158 = scmp.le.s32.totalorder 1, %s22
      %p159 = scmp.lt.s32.totalorder %s22, 3
      %p160 = pnand %p158, %p159
      %p161 = pneg %p160
      // Predicated region
      $region9: #{tpu_custom_call.1} parent=5 // pred_check
        _
      $region10: #{tpu_custom_call.1} parent=5 // pred_check_branch
        %163 = sbr.rel (%p160) target = $region12
      $region11: #{tpu_custom_call.1} parent=5 // pred_region
        %s164 = ssub.s32 %s22, 1
      $region12: #{tpu_custom_call.1} parent=5 // pred_fallthru
        _
      %p165 = scmp.lt.s32.totalorder %s22, 2
      // Predicated region
      $region13: #{tpu_custom_call.1} parent=5 // pred_check
        %p166 = pneg %p165
      $region14: #{tpu_custom_call.1} parent=5 // pred_check_branch
        %168 = sbr.rel (%p166) target = $region16
      $region15: #{tpu_custom_call.1} parent=5 // pred_region
        // Predicated region
        $region17: #{tpu_custom_call.1} parent=15 // pred_check
          %p169 = pneg %p60
        $region18: #{tpu_custom_call.1} parent=15 // pred_check_branch
          %171 = sbr.rel (%p169) target = $region20
        $region19: #{tpu_custom_call.1} parent=15 // pred_region
          %s172 = sand.u32 %s50, 1
          %s173 = scalar_lea.sflag [#allocation5], %s172
          %s174 = sand.u32 %s50, 1
          %s175 = smul.addr %s174, 16
          %s176 = scalar_lea.vmem [#allocation4], %s175
          %s177 = sadd.s32 %s29, %s30
          %p178 = scmp.lt.s32.totalorder %s177, 0
          %s179 = scalar_select %p178, %s177, 0
          %181 = vsyncadd %s173, 0
          %s182 = smul.addr %s179, 8
          %s183 = smul.addr %s182, 2
          %s184 = scalar_lea.hbm %s0, %s183
          %s186 = sshll.u32 %s184, 4
          %s187 = int_to_ptr.hbm [resolvable:$true] %s186
          %s188 = sshll.u32 %s176, 4
          %s189 = int_to_ptr.vmem [resolvable:$true] %s188
          %191 = dma.hbm_to_vmem [thread:$0]  %s187, 256, %s189, %s173
        $region20: #{tpu_custom_call.1} parent=15 // pred_fallthru
          _
        // Predicated region
        $region21: #{tpu_custom_call.1} parent=15 // pred_check
          %p192 = pneg %p92
        $region22: #{tpu_custom_call.1} parent=15 // pred_check_branch
          %194 = sbr.rel (%p192) target = $region24
        $region23: #{tpu_custom_call.1} parent=15 // pred_region
          %s195 = sand.u32 %s82, 1
          %s196 = scalar_lea.sflag [#allocation8], %s195
          %s197 = sand.u32 %s82, 1
          %s198 = smul.addr %s197, 16
          %s199 = scalar_lea.vmem [#allocation7], %s198
          %s200 = sadd.s32 %s29, %s30
          %p201 = scmp.lt.s32.totalorder %s200, 0
          %s202 = scalar_select %p201, %s200, 0
          %204 = vsyncadd %s196, 0
          %s205 = smul.addr %s202, 8
          %s206 = smul.addr %s205, 2
          %s207 = scalar_lea.hbm %s1, %s206
          %s209 = sshll.u32 %s207, 4
          %s210 = int_to_ptr.hbm [resolvable:$true] %s209
          %s211 = sshll.u32 %s199, 4
          %s212 = int_to_ptr.vmem [resolvable:$true] %s211
          %214 = dma.hbm_to_vmem [thread:$0]  %s210, 256, %s212, %s196
        $region24: #{tpu_custom_call.1} parent=15 // pred_fallthru
          _
      $region16: #{tpu_custom_call.1} parent=5 // pred_fallthru
        _
      %p215 = scmp.le.s32.totalorder 1, %s22
      %p216 = scmp.lt.s32.totalorder %s22, 3
      %p217 = pnand %p215, %p216
      %p218 = pneg %p217
      // Predicated region
      $region25: #{tpu_custom_call.1} parent=5 // pred_check
        _
      $region26: #{tpu_custom_call.1} parent=5 // pred_check_branch
        %220 = sbr.rel (%p217) target = $region28
      $region27: #{tpu_custom_call.1} parent=5 // pred_region
        %s221 = ssub.s32 %s22, 1
        %s222 = sand.u32 %s53, 1
        %s223 = scalar_lea.sflag [#allocation5], %s222
        %s224 = sand.u32 %s53, 1
        %s225 = smul.addr %s224, 16
        %s226 = scalar_lea.vmem [#allocation4], %s225
        // Predicated region
        $region29: #{tpu_custom_call.1} parent=27 // pred_check
          %p227 = pneg %p66
        $region30: #{tpu_custom_call.1} parent=27 // pred_check_branch
          %229 = sbr.rel (%p227) target = $region32
        $region31: #{tpu_custom_call.1} parent=27 // pred_region
          %231 = dma.done %s223, 256
        $region32: #{tpu_custom_call.1} parent=27 // pred_fallthru
          _
        %s232 = sand.u32 %s85, 1
        %s233 = scalar_lea.sflag [#allocation8], %s232
        %s234 = sand.u32 %s85, 1
        %s235 = smul.addr %s234, 16
        %s236 = scalar_lea.vmem [#allocation7], %s235
        // Predicated region
        $region33: #{tpu_custom_call.1} parent=27 // pred_check
          %p237 = pneg %p98
        $region34: #{tpu_custom_call.1} parent=27 // pred_check_branch
          %239 = sbr.rel (%p237) target = $region36
        $region35: #{tpu_custom_call.1} parent=27 // pred_region
          %241 = dma.done %s233, 256
        $region36: #{tpu_custom_call.1} parent=27 // pred_fallthru
          _
        %s242 = sand.u32 %s53, 1
        %s243 = scalar_lea.sflag [#allocation5], %s242
        %s244 = sand.u32 %s53, 1
        %s245 = smul.addr %s244, 16
        %s246 = scalar_lea.vmem [#allocation4], %s245
        %p247 = pneg %p66
        %p248 = pneg %p63
        %s249 = sand.u32 %s85, 1
        %s250 = scalar_lea.sflag [#allocation8], %s249
        %s251 = sand.u32 %s85, 1
        %s252 = smul.addr %s251, 16
        %s253 = scalar_lea.vmem [#allocation7], %s252
        %p254 = pneg %p98
        %p255 = pneg %p95
        %p256 = pneg %p124
        %p257 = pneg %p121
        %s258 = sand.u32 %s111, 1
        %s259 = scalar_lea.sflag [#allocation6], %s258
        %s260 = sand.u32 %s111, 1
        %s261 = smul.addr %s260, 8
        %s262 = scalar_lea.vmem [#allocation9], %s261
        %p263 = pneg %p150
        %p264 = pneg %p147
        %s265 = sand.u32 %s137, 1
        %s266 = scalar_lea.sflag [#allocation11], %s265
        %s267 = sand.u32 %s137, 1
        %s268 = smul.addr %s267, 8
        %s269 = scalar_lea.vmem [#allocation10], %s268
        %s270 = sadd.s32 %s31, %s32
        %p271 = scmp.lt.s32.totalorder %s270, 0
        %s272 = scalar_select %p271, %s270, 0
        %s273 = sadd.s32 %s31, %s32
        %p274 = scmp.lt.s32.totalorder %s273, 0
        %s275 = scalar_select %p274, %s273, 0
        %p276 = scmp.eq.s32.totalorder %s32, 0
        // Predicated region
        $region37: #{tpu_custom_call.1} parent=27 // pred_check
          %p277 = pneg %p276
        $region38: #{tpu_custom_call.1} parent=27 // pred_check_branch
          %279 = sbr.rel (%p277) target = $region40
        $region39: #{tpu_custom_call.1} parent=27 // pred_region
          %280 = vst [vmem:[#allocation2] sm:$0xff] 0.0
          %281 = vst [vmem:[#allocation2 + $0x8] sm:$0xff] 0.0
          %282 = vst [vmem:[#allocation3] sm:$0xff] 0.0
          %283 = vst [vmem:[#allocation3 + $0x8] sm:$0xff] 0.0
        $region40: #{tpu_custom_call.1} parent=27 // pred_fallthru
          _
        %v284 = vld [vmem:[%s226] sm:$0xff]
        %v285 = vld [vmem:[%s226 + $0x8] sm:$0xff]
        %v286 = vld [vmem:[%s236] sm:$0xff]
        %v287 = vld [vmem:[%s236 + $0x8] sm:$0xff]
        %v288 = vmul.f32 %v284, %v286
        %v289 = vmul.f32 %v285, %v287
        %v290 = vadd.f32 %v284, %v286
        %v291 = vadd.f32 %v285, %v287
        %s292 = sadd.s32 %s31, %s32
        %s293 = smul.u32 %s292, 2
        %s294 = ssub.s32 2, %s293
        %v295 = vlaneseq
        %v296 = vshrl.u32 %v295, 7
        %v297 = vstv %s294
        %vm298 = vcmp.lt.s32.totalorder %v296, %v297
        %301 = vst [vmem:[#allocation1] ss:$4 sm:$0xff] %v288
        %s302 = scalar_lea.vmem [#allocation1], 32
        %303 = vst [vmem:[%s302] ss:$4 sm:$0xff] %v289
        %v304 = vld.sshfl [vmem:[#allocation1] sm:$0xff pattern:$0x73625140]
        %v305 = vld.sshfl [vmem:[#allocation1 + $0x8] sm:$0xff pattern:$0x73625140]
        %v306 = vld.sshfl [vmem:[#allocation1 + $0x10] sm:$0xff pattern:$0x73625140]
        %v307 = vld.sshfl [vmem:[#allocation1 + $0x18] sm:$0xff pattern:$0x73625140]
        %v308 = vld.sshfl [vmem:[#allocation1 + $0x20] sm:$0xff pattern:$0x73625140]
        %v309 = vld.sshfl [vmem:[#allocation1 + $0x28] sm:$0xff pattern:$0x73625140]
        %v310 = vld.sshfl [vmem:[#allocation1 + $0x30] sm:$0xff pattern:$0x73625140]
        %v311 = vld.sshfl [vmem:[#allocation1 + $0x38] sm:$0xff pattern:$0x73625140]
        %v320 = vsel %vm298, %v304, 0.0
        %v321 = vsel %vm298, %v305, 0.0
        %v322 = vsel %vm298, %v306, 0.0
        %v323 = vsel %vm298, %v307, 0.0
        %v324 = vsel %vm298, %v308, 0.0
        %v325 = vsel %vm298, %v309, 0.0
        %v326 = vsel %vm298, %v310, 0.0
        %v327 = vsel %vm298, %v311, 0.0
        %330 = vst [vmem:[#allocation1] ss:$4 sm:$0xff] %v290
        %s331 = scalar_lea.vmem [#allocation1], 32
        %332 = vst [vmem:[%s331] ss:$4 sm:$0xff] %v291
        %v333 = vld.sshfl [vmem:[#allocation1] sm:$0xff pattern:$0x73625140]
        %v334 = vld.sshfl [vmem:[#allocation1 + $0x8] sm:$0xff pattern:$0x73625140]
        %v335 = vld.sshfl [vmem:[#allocation1 + $0x10] sm:$0xff pattern:$0x73625140]
        %v336 = vld.sshfl [vmem:[#allocation1 + $0x18] sm:$0xff pattern:$0x73625140]
        %v337 = vld.sshfl [vmem:[#allocation1 + $0x20] sm:$0xff pattern:$0x73625140]
        %v338 = vld.sshfl [vmem:[#allocation1 + $0x28] sm:$0xff pattern:$0x73625140]
        %v339 = vld.sshfl [vmem:[#allocation1 + $0x30] sm:$0xff pattern:$0x73625140]
        %v340 = vld.sshfl [vmem:[#allocation1 + $0x38] sm:$0xff pattern:$0x73625140]
        %v349 = vsel %vm298, %v333, 0.0
        %v350 = vsel %vm298, %v334, 0.0
        %v351 = vsel %vm298, %v335, 0.0
        %v352 = vsel %vm298, %v336, 0.0
        %v353 = vsel %vm298, %v337, 0.0
        %v354 = vsel %vm298, %v338, 0.0
        %v355 = vsel %vm298, %v339, 0.0
        %v356 = vsel %vm298, %v340, 0.0
        %v357 = vld [vmem:[#allocation2] sm:$0xff]
        %v358 = vld [vmem:[#allocation2 + $0x8] sm:$0xff]
        %v367 = vrot.slane %v321, 6
        %v368 = vrot.slane %v322, 4
        %v369 = vrot.slane %v323, 2
        %v370 = vrot.slane %v325, 6
        %v371 = vrot.slane %v326, 4
        %v372 = vrot.slane %v327, 2
        %vm373 = vcmask 1041408
        %v374 = vsel %vm373, %v320, %v367
        %vm375 = vcmask 1045508
        %v376 = vsel %vm375, %v368, %v369
        %vm377 = vcmask 1043456
        %v378 = vsel %vm377, %v374, %v376
        %v379 = vsel %vm373, %v324, %v370
        %v380 = vsel %vm375, %v371, %v372
        %v381 = vsel %vm377, %v379, %v380
        %v384 = vadd.f32 %v357, %v378
        %v385 = vadd.f32 %v358, %v381
        %386 = vst [vmem:[#allocation2] sm:$0xff] %v384
        %387 = vst [vmem:[#allocation2 + $0x8] sm:$0xff] %v385
        %v388 = vld [vmem:[#allocation3] sm:$0xff]
        %v389 = vld [vmem:[#allocation3 + $0x8] sm:$0xff]
        %v398 = vrot.slane %v350, 6
        %v399 = vrot.slane %v351, 4
        %v400 = vrot.slane %v352, 2
        %v401 = vrot.slane %v354, 6
        %v402 = vrot.slane %v355, 4
        %v403 = vrot.slane %v356, 2
        %v404 = vsel %vm373, %v349, %v398
        %v405 = vsel %vm375, %v399, %v400
        %v406 = vsel %vm377, %v404, %v405
        %v407 = vsel %vm373, %v353, %v401
        %v408 = vsel %vm375, %v402, %v403
        %v409 = vsel %vm377, %v407, %v408
        %v412 = vadd.f32 %v388, %v406
        %v413 = vadd.f32 %v389, %v409
        %414 = vst [vmem:[#allocation3] sm:$0xff] %v412
        %415 = vst [vmem:[#allocation3 + $0x8] sm:$0xff] %v413
        // Predicated region
        $region41: #{tpu_custom_call.1} parent=27 // pred_check
          %p416 = pneg %p276
        $region42: #{tpu_custom_call.1} parent=27 // pred_check_branch
          %418 = sbr.rel (%p416) target = $region44
        $region43: #{tpu_custom_call.1} parent=27 // pred_region
          %v419 = vld [vmem:[#allocation2] sm:$0xff]
          %v420 = vld [vmem:[#allocation2 + $0x8] sm:$0xff]
          %423 = vst [vmem:[#allocation1] ss:$4 sm:$0xff] %v419
          %s424 = scalar_lea.vmem [#allocation1], 32
          %425 = vst [vmem:[%s424] ss:$4 sm:$0xff] %v420
          %v426 = vld.sshfl [vmem:[#allocation1] sm:$0xff pattern:$0x73625140]
          %v427 = vld.sshfl [vmem:[#allocation1 + $0x8] sm:$0xff pattern:$0x73625140]
          %v428 = vld.sshfl [vmem:[#allocation1 + $0x10] sm:$0xff pattern:$0x73625140]
          %v429 = vld.sshfl [vmem:[#allocation1 + $0x18] sm:$0xff pattern:$0x73625140]
          %v430 = vld.sshfl [vmem:[#allocation1 + $0x20] sm:$0xff pattern:$0x73625140]
          %v431 = vld.sshfl [vmem:[#allocation1 + $0x28] sm:$0xff pattern:$0x73625140]
          %v432 = vld.sshfl [vmem:[#allocation1 + $0x30] sm:$0xff pattern:$0x73625140]
          %v433 = vld.sshfl [vmem:[#allocation1 + $0x38] sm:$0xff pattern:$0x73625140]
          %v442 = vsel %vm373, %v426, 0.0
          %v443 = vsel %vm373, %v427, 0.0
          %v444 = vadd.f32 %v442, %v443
          %v445 = vsel %vm373, %v428, 0.0
          %v446 = vadd.f32 %v444, %v445
          %v447 = vsel %vm373, %v429, 0.0
          %v448 = vadd.f32 %v446, %v447
          %v449 = vsel %vm373, %v430, 0.0
          %v450 = vadd.f32 %v448, %v449
          %v451 = vsel %vm373, %v431, 0.0
          %v452 = vadd.f32 %v450, %v451
          %v453 = vsel %vm373, %v432, 0.0
          %v454 = vadd.f32 %v452, %v453
          %v455 = vsel %vm373, %v433, 0.0
          %v456 = vadd.f32 %v454, %v455
          %457 = vadd.xlane.f32.xlu0 %v456
          %v458 = vpop.xlane.xlu0 %457
          %v459 = vrot.slane %v458, 4
          %v460 = vadd.f32 %v458, %v459
          %v461 = vrot.slane %v460, 2
          %v462 = vadd.f32 %v460, %v461
          %v463 = vrot.slane %v462, 1
          %v464 = vadd.f32 %v462, %v463
          %s465 = vtos %v464
          %v466 = vld [vmem:[#allocation3] sm:$0xff]
          %v467 = vld [vmem:[#allocation3 + $0x8] sm:$0xff]
          %470 = vst [vmem:[#allocation1] ss:$4 sm:$0xff] %v466
          %s471 = scalar_lea.vmem [#allocation1], 32
          %472 = vst [vmem:[%s471] ss:$4 sm:$0xff] %v467
          %v473 = vld.sshfl [vmem:[#allocation1] sm:$0xff pattern:$0x73625140]
          %v474 = vld.sshfl [vmem:[#allocation1 + $0x8] sm:$0xff pattern:$0x73625140]
          %v475 = vld.sshfl [vmem:[#allocation1 + $0x10] sm:$0xff pattern:$0x73625140]
          %v476 = vld.sshfl [vmem:[#allocation1 + $0x18] sm:$0xff pattern:$0x73625140]
          %v477 = vld.sshfl [vmem:[#allocation1 + $0x20] sm:$0xff pattern:$0x73625140]
          %v478 = vld.sshfl [vmem:[#allocation1 + $0x28] sm:$0xff pattern:$0x73625140]
          %v479 = vld.sshfl [vmem:[#allocation1 + $0x30] sm:$0xff pattern:$0x73625140]
          %v480 = vld.sshfl [vmem:[#allocation1 + $0x38] sm:$0xff pattern:$0x73625140]
          %v489 = vsel %vm373, %v473, 0.0
          %v490 = vsel %vm373, %v474, 0.0
          %v491 = vadd.f32 %v489, %v490
          %v492 = vsel %vm373, %v475, 0.0
          %v493 = vadd.f32 %v491, %v492
          %v494 = vsel %vm373, %v476, 0.0
          %v495 = vadd.f32 %v493, %v494
          %v496 = vsel %vm373, %v477, 0.0
          %v497 = vadd.f32 %v495, %v496
          %v498 = vsel %vm373, %v478, 0.0
          %v499 = vadd.f32 %v497, %v498
          %v500 = vsel %vm373, %v479, 0.0
          %v501 = vadd.f32 %v499, %v500
          %v502 = vsel %vm373, %v480, 0.0
          %v503 = vadd.f32 %v501, %v502
          %504 = vadd.xlane.f32.xlu0 %v503
          %v505 = vpop.xlane.xlu0 %504
          %v506 = vrot.slane %v505, 4
          %v507 = vadd.f32 %v505, %v506
          %v508 = vrot.slane %v507, 2
          %v509 = vadd.f32 %v507, %v508
          %v510 = vrot.slane %v509, 1
          %v511 = vadd.f32 %v509, %v510
          %s512 = vtos %v511
          %v513 = vstv %s465
          %514 = vst [vmem:[%s262] sm:$0xff] %v513
          %v515 = vstv %s512
          %516 = vst [vmem:[%s269] sm:$0xff] %v515
        $region44: #{tpu_custom_call.1} parent=27 // pred_fallthru
          _
        %s517 = sand.u32 %s111, 1
        %s518 = scalar_lea.sflag [#allocation6], %s517
        %s519 = sand.u32 %s111, 1
        %s520 = smul.addr %s519, 8
        %s521 = scalar_lea.vmem [#allocation9], %s520
        %s522 = sand.u32 %s137, 1
        %s523 = scalar_lea.sflag [#allocation11], %s522
        %s524 = sand.u32 %s137, 1
        %s525 = smul.addr %s524, 8
        %s526 = scalar_lea.vmem [#allocation10], %s525
        // Predicated region
        $region45: #{tpu_custom_call.1} parent=27 // pred_check
          %p527 = pneg %p121
        $region46: #{tpu_custom_call.1} parent=27 // pred_check_branch
          %529 = sbr.rel (%p527) target = $region48
        $region47: #{tpu_custom_call.1} parent=27 // pred_region
          %531 = vsyncadd %s518, 0
          %s532 = smul.addr %s31, 8
          %s533 = scalar_lea.hbm %s2, %s532
          %s535 = sshll.u32 %s521, 4
          %s536 = int_to_ptr.vmem [resolvable:$true] %s535
          %s537 = sshll.u32 %s533, 4
          %s538 = int_to_ptr.hbm [resolvable:$true] %s537
          %540 = dma.vmem_to_hbm [thread:$0]  %s536, 128, %s538, %s518
        $region48: #{tpu_custom_call.1} parent=27 // pred_fallthru
          _
        // Predicated region
        $region49: #{tpu_custom_call.1} parent=27 // pred_check
          %p541 = pneg %p147
        $region50: #{tpu_custom_call.1} parent=27 // pred_check_branch
          %543 = sbr.rel (%p541) target = $region52
        $region51: #{tpu_custom_call.1} parent=27 // pred_region
          %545 = vsyncadd %s523, 0
          %s546 = smul.addr %s31, 8
          %s547 = scalar_lea.hbm %s3, %s546
          %s549 = sshll.u32 %s526, 4
          %s550 = int_to_ptr.vmem [resolvable:$true] %s549
          %s551 = sshll.u32 %s547, 4
          %s552 = int_to_ptr.hbm [resolvable:$true] %s551
          %554 = dma.vmem_to_hbm [thread:$0]  %s550, 128, %s552, %s523
        $region52: #{tpu_custom_call.1} parent=27 // pred_fallthru
          _
      $region28: #{tpu_custom_call.1} parent=5 // pred_fallthru
        _
      %p555 = scmp.le.s32.totalorder 2, %s22
      // Predicated region
      $region53: #{tpu_custom_call.1} parent=5 // pred_check
        %p556 = pneg %p555
      $region54: #{tpu_custom_call.1} parent=5 // pred_check_branch
        %558 = sbr.rel (%p556) target = $region56
      $region55: #{tpu_custom_call.1} parent=5 // pred_region
        %s559 = ssub.s32 %s22, 2
        // Predicated region
        $region57: #{tpu_custom_call.1} parent=55 // pred_check
          %p560 = pneg %p127
        $region58: #{tpu_custom_call.1} parent=55 // pred_check_branch
          %562 = sbr.rel (%p560) target = $region60
        $region59: #{tpu_custom_call.1} parent=55 // pred_region
          %s563 = sand.u32 %s112, 1
          %s564 = scalar_lea.sflag [#allocation6], %s563
          %s565 = sand.u32 %s112, 1
          %s566 = smul.addr %s565, 8
          %s567 = scalar_lea.vmem [#allocation9], %s566
          %569 = dma.done %s564, 128
        $region60: #{tpu_custom_call.1} parent=55 // pred_fallthru
          _
        // Predicated region
        $region61: #{tpu_custom_call.1} parent=55 // pred_check
          %p570 = pneg %p153
        $region62: #{tpu_custom_call.1} parent=55 // pred_check_branch
          %572 = sbr.rel (%p570) target = $region64
        $region63: #{tpu_custom_call.1} parent=55 // pred_region
          %s573 = sand.u32 %s138, 1
          %s574 = scalar_lea.sflag [#allocation11], %s573
          %s575 = sand.u32 %s138, 1
          %s576 = smul.addr %s575, 8
          %s577 = scalar_lea.vmem [#allocation10], %s576
          %579 = dma.done %s574, 128
        $region64: #{tpu_custom_call.1} parent=55 // pred_fallthru
          _
      $region56: #{tpu_custom_call.1} parent=5 // pred_fallthru
        _
    $region6: #{tpu_custom_call.1} parent=1 // loop_footer
      %s26 = sadd.s32 1, %s22
    $region7: #{tpu_custom_call.1} parent=1 // loop_footer_branch
      %21 = sbr.rel target = $region3
    $region8: #{tpu_custom_call.1} parent=1 // loop_exit
      _
    %580 = vsyncpa [#allocation5], 1
    %s581 = scalar_lea.sflag [#allocation5], 1
    %582 = vsyncpa %s581, 1
    %583 = vsyncpa [#allocation8], 1
    %s584 = scalar_lea.sflag [#allocation8], 1
    %585 = vsyncpa %s584, 1
    %586 = vsyncpa [#allocation6], 1
    %s587 = scalar_lea.sflag [#allocation6], 1
    %588 = vsyncpa %s587, 1
    %589 = vsyncpa [#allocation11], 1
    %s590 = scalar_lea.sflag [#allocation11], 1
    %591 = vsyncpa %s590, 1

</llo_original>
